<compile_context>
chip_gen: v7x
topology: tpu7x:2x2x1
jax: 0.10.0
libtpu: 0.0.40
codegen_flags: <defaults>
</compile_context>

<pallas_src>
import functools

import jax
import jax.numpy as jnp
from jax import lax
from jax.experimental import pallas as pl
from jax.experimental.pallas import tpu as pltpu


_LANE = 128
_CHUNK_ROWS = 32                               # vreg-carry height (4 f32 vregs per quantity)
_TILE_TARGET_BYTES = 8 * 1024 * 1024           # per input tile buffer (row-tiled path)
_BATCH_BLOCK_TARGET_BYTES = 1 * 1024 * 1024    # per input block (batch-blocked path)
_TILED_PATH_MIN_BATCH_BYTES = 1 * 1024 * 1024  # per-batch slab size above which we row-tile
_VMEM_LIMIT_CAP = 32 * 1024 * 1024             # safe on v5e / v6e / v7x
_VMEM_LIMIT_FLOOR = 16 * 1024 * 1024


def _round_up(v, m):
    return ((v + m - 1) // m) * m


def _pick_chunk(tile_rows):
    for c in (_CHUNK_ROWS, 16, 8):
        if tile_rows % c == 0:
            return c
    return tile_rows


def _hoyer_sums_batch_kernel(x_ref, sabs_ref, ssq_ref):
    """Block (TB, R, 128): per-batch-element sum|x| and sum x^2 -> (TB, 1, 1) each."""
    x = x_ref[...].astype(jnp.float32)                  # (TB, R, 128)
    abs_cols = jnp.sum(jnp.abs(x), axis=1)              # (TB, 128): VPU adds over rows
    sq_cols = jnp.sum(x * x, axis=1)                    # (TB, 128)
    sabs = jnp.sum(abs_cols, axis=-1, keepdims=True)    # (TB, 1): one cross-lane reduce per elem
    ssq = jnp.sum(sq_cols, axis=-1, keepdims=True)
    sabs_ref[...] = sabs[:, :, None]
    ssq_ref[...] = ssq[:, :, None]


def _hoyer_sums_tiled_kernel(x_ref, sabs_ref, ssq_ref, acc_abs_ref, acc_sq_ref, *,
                             tile_rows, chunk, rows_valid_last):
    """grid=(B*S, K): streams (tile_rows, 128) row tiles; emits per-(b,split) partial sums."""
    k = pl.program_id(1)
    nk = pl.num_programs(1)
    n_chunks = tile_rows // chunk

    @pl.when(k == 0)
    def _():
        acc_abs_ref[...] = jnp.zeros_like(acc_abs_ref)
        acc_sq_ref[...] = jnp.zeros_like(acc_sq_ref)

    def accumulate(masked):
        # Vreg-resident partial sums: ~1 vld + 4 VALU per input vreg, no per-vreg stores.
        def body(i, carry):
            a_abs, a_sq = carry
            off = pl.multiple_of(i * chunk, chunk)
            c = x_ref[0, pl.ds(off, chunk), :].astype(jnp.float32)   # (chunk, 128)
            if masked:
                row = lax.broadcasted_iota(jnp.int32, (chunk, _LANE), 0)
                c = jnp.where(row + off < rows_valid_last, c, 0.0)
            return a_abs + jnp.abs(c), a_sq + c * c

        zero = jnp.zeros((chunk, _LANE), jnp.float32)
        a_abs, a_sq = lax.fori_loop(0, n_chunks, body, (zero, zero))
        acc_abs_ref[...] += a_abs          # one tiny scratch RMW per tile
        acc_sq_ref[...] += a_sq

    if rows_valid_last == tile_rows:
        accumulate(masked=False)           # no ragged tile: always the fast path
    else:
        @pl.when(k < nk - 1)
        def _():
            accumulate(masked=False)

        @pl.when(k == nk - 1)
        def _():
            accumulate(masked=True)        # mask only the (single) ragged last tile

    @pl.when(k == nk - 1)
    def _():
        sabs_ref[0, 0, 0] = jnp.sum(acc_abs_ref[...])
        ssq_ref[0, 0, 0] = jnp.sum(acc_sq_ref[...])


def inverted_hoyer_measure(x, threshold, negative_slope=0.01, *,
                           force_tiled=False, tile_rows=None):
    """x: (B, ...) float array (f32/bf16). Returns scalar mean Hoyer loss (f32)."""
    B = x.shape[0]
    n = 1
    for d in x.shape[1:]:
        n *= d
    itemsize = jnp.dtype(x.dtype).itemsize
    bytes_per_batch = n * itemsize

    use_tiled = force_tiled or bytes_per_batch > _TILED_PATH_MIN_BATCH_BYTES
    xf = x.reshape(B, n)

    cost = pl.CostEstimate(flops=4 * B * n, transcendentals=0,
                           bytes_accessed=B * n * itemsize + 8 * B)

    if use_tiled:
        # Row-tiled streaming path; split the row axis in two when B == 1 so the
        # "parallel" batch grid axis can feed both v7x TensorCores.
        split = 2 if B == 1 else 1
        n_pad = _round_up(n, _LANE * split)
        if n_pad != n:
            xf = jnp.pad(xf, ((0, 0), (0, n_pad - n)))   # zeros are exact for both sums
        r = n_pad // (_LANE * split)
        x3 = xf.reshape(B * split, r, _LANE)

        target_rows = max(_CHUNK_ROWS, _TILE_TARGET_BYTES // (_LANE * itemsize))
        if tile_rows is not None:
            tr = max(1, min(int(tile_rows), r))
            if tr < r:
                tr = max(8, (tr // 8) * 8)
            tr = min(tr, r)
        elif r <= target_rows:
            tr = r
        else:
            tr = (target_rows // _CHUNK_ROWS) * _CHUNK_ROWS
        chunk = _pick_chunk(tr)
        num_k = pl.cdiv(r, tr)
        rows_valid_last = r - (num_k - 1) * tr

        # Real per-step footprint: 2 double-buffered input tiles + 2 tiny f32 accumulators.
        vmem_limit = 2 * tr * _LANE * itemsize + 2 * chunk * _LANE * 4 + (4 << 20)
        vmem_limit = int(min(max(vmem_limit, _VMEM_LIMIT_FLOOR), _VMEM_LIMIT_CAP))

        kernel = functools.partial(_hoyer_sums_tiled_kernel, tile_rows=tr,
                                   chunk=chunk, rows_valid_last=rows_valid_last)
        sabs, ssq = pl.pallas_call(
            kernel,
            out_shape=(jax.ShapeDtypeStruct((B * split, 1, 1), jnp.float32),
                       jax.ShapeDtypeStruct((B * split, 1, 1), jnp.float32)),
            grid_spec=pltpu.PrefetchScalarGridSpec(
                num_scalar_prefetch=0,
                grid=(B * split, num_k),
                in_specs=[pl.BlockSpec((1, tr, _LANE), lambda b, k: (b, k, 0))],
                out_specs=(pl.BlockSpec((1, 1, 1), lambda b, k: (b, 0, 0)),
                           pl.BlockSpec((1, 1, 1), lambda b, k: (b, 0, 0))),
                scratch_shapes=[pltpu.VMEM((chunk, _LANE), jnp.float32),
                                pltpu.VMEM((chunk, _LANE), jnp.float32)],
            ),
            compiler_params=pltpu.CompilerParams(
                dimension_semantics=("parallel", "arbitrary"),
                vmem_limit_bytes=vmem_limit),
            cost_estimate=cost,
        )(x3)
        sum_abs = jnp.sum(sabs.reshape(B, split), axis=1)
        sum_sq = jnp.sum(ssq.reshape(B, split), axis=1)
    else:
        # Batch-blocked path: whole per-batch slab in one block, pipelined over batch chunks.
        n_pad = _round_up(n, _LANE)
        if n_pad != n:
            xf = jnp.pad(xf, ((0, 0), (0, n_pad - n)))
        r = n_pad // _LANE
        x3 = xf.reshape(B, r, _LANE)

        per_batch_block_bytes = max(1, r * _LANE * itemsize)
        tb = max(1, min(B, _BATCH_BLOCK_TARGET_BYTES // per_batch_block_bytes))
        grid_b = pl.cdiv(B, tb)
        # A partial trailing batch block reads garbage rows; their outputs land out of
        # bounds and are dropped, so no batch padding is needed.

        blk_f32 = tb * r * _LANE * 4
        vmem_limit = 2 * tb * r * _LANE * itemsize + 5 * blk_f32 + (4 << 20)
        vmem_limit = int(min(max(vmem_limit, _VMEM_LIMIT_FLOOR), _VMEM_LIMIT_CAP))

        sabs, ssq = pl.pallas_call(
            _hoyer_sums_batch_kernel,
            out_shape=(jax.ShapeDtypeStruct((B, 1, 1), jnp.float32),
                       jax.ShapeDtypeStruct((B, 1, 1), jnp.float32)),
            grid_spec=pltpu.PrefetchScalarGridSpec(
                num_scalar_prefetch=0,
                grid=(grid_b,),
                in_specs=[pl.BlockSpec((tb, r, _LANE), lambda i: (i, 0, 0))],
                out_specs=(pl.BlockSpec((tb, 1, 1), lambda i: (i, 0, 0)),
                           pl.BlockSpec((tb, 1, 1), lambda i: (i, 0, 0))),
            ),
            compiler_params=pltpu.CompilerParams(
                dimension_semantics=("parallel",),
                vmem_limit_bytes=vmem_limit),
            cost_estimate=cost,
        )(x3)
        sum_abs = sabs.reshape(B)
        sum_sq = ssq.reshape(B)

    # O(B) finalize in plain JAX (exactly the PyTorch math; sqrt_n uses the true n).
    sqrt_n = jnp.sqrt(jnp.float32(n))
    sqrt_sum_squares = jnp.sqrt(sum_sq)
    numerator = sqrt_n - sum_abs / sqrt_sum_squares
    mod_hoyer = 1.0 - numerator / (sqrt_n - 1.0)
    v = mod_hoyer - jnp.float32(threshold)
    loss = jnp.where(v >= 0.0, v, jnp.float32(negative_slope) * v)
    return jnp.mean(loss)


def _reference(x, threshold, negative_slope=0.01):
    """Pure-JAX reference mirroring the PyTorch forward."""
    x = x.astype(jnp.float32)
    B = x.shape[0]
    n = x[0].size
    sqrt_n = jnp.sqrt(jnp.float32(n))
    sum_abs_x = jnp.sum(jnp.abs(x).reshape(B, -1), axis=1)
    sqrt_sum_squares = jnp.sqrt(jnp.sum(jnp.square(x).reshape(B, -1), axis=1))
    numerator = sqrt_n - sum_abs_x / sqrt_sum_squares
    mod_hoyer = 1.0 - numerator / (sqrt_n - 1.0)
    v = mod_hoyer - threshold
    loss = jnp.where(v >= 0.0, v, negative_slope * v)
    return jnp.mean(loss)


if __name__ == "__main__":
    key = jax.random.PRNGKey(0)
    threshold = 0.5                       # module __init__ arg (deterministic choice)
    k1, k2, k3 = jax.random.split(key, 3)

    # 1) Batch-blocked path, tiny input: (batch=2, seq=8, hidden=32) -> single grid step.
    x1 = jax.random.normal(k1, (2, 8, 32), dtype=jnp.float32)
    o1 = jax.block_until_ready(inverted_hoyer_measure(x1, threshold))
    r1 = jax.block_until_ready(_reference(x1, threshold))
    assert jnp.allclose(o1, r1, atol=1e-5, rtol=1e-5), (o1, r1)

    # 2) Row-tiled path (forced), ragged last tile: n=6144 -> 48 rows of 128, 32-row tiles.
    x2 = jax.random.normal(k2, (2, 64, 96), dtype=jnp.float32)
    o2 = jax.block_until_ready(
        inverted_hoyer_measure(x2, threshold, force_tiled=True, tile_rows=32))
    r2 = jax.block_until_ready(_reference(x2, threshold))
    assert jnp.allclose(o2, r2, atol=1e-5, rtol=1e-5), (o2, r2)

    # 3) Row-tiled path with B=1 -> core-split S=2 + ragged last tile (40 rows per split).
    x3 = jax.random.normal(k3, (1, 80, 128), dtype=jnp.float32)
    o3 = jax.block_until_ready(
        inverted_hoyer_measure(x3, threshold, force_tiled=True, tile_rows=32))
    r3 = jax.block_until_ready(_reference(x3, threshold))
    assert jnp.allclose(o3, r3, atol=1e-5, rtol=1e-5), (o3, r3)

    # 4) bf16 input through the row-tiled path (f32 in-kernel accumulation).
    x4 = x2.astype(jnp.bfloat16)
    o4 = jax.block_until_ready(
        inverted_hoyer_measure(x4, threshold, force_tiled=True, tile_rows=32))
    r4 = jax.block_until_ready(_reference(x4, threshold))
    assert jnp.allclose(o4, r4, atol=1e-4, rtol=1e-4), (o4, r4)

    print("KERNEL_OK")
</pallas_src>

<mosaic_0001>
module attributes {stable_mosaic.version = 11 : i64} {
  func.func @_hoyer_sums_batch_kernel(%arg0: i32, %arg1: memref<2x2x128xf32, #tpu.memory_space<vmem>>, %arg2: memref<2x1x1xf32, #tpu.memory_space<vmem>>, %arg3: memref<2x1x1xf32, #tpu.memory_space<vmem>>) attributes {dimension_semantics = [#tpu.dimension_semantics<parallel>], iteration_bounds = array<i64: 1>, scalar_prefetch = 0 : i64, scratch_operands = 0 : i64, tpu.core_type = #tpu.core_type<tc>, window_params = [{transform_indices = @transform_0, window_bounds = array<i64: 2, 2, 128>}, {transform_indices = @transform_1, window_bounds = array<i64: 2, 1, 1>}, {transform_indices = @transform_2, window_bounds = array<i64: 2, 1, 1>}]} {
    %c0 = arith.constant 0 : index
    %c0_0 = arith.constant 0 : index
    %c0_1 = arith.constant 0 : index
    %0 = vector.load %arg1[%c0, %c0_0, %c0_1] : memref<2x2x128xf32, #tpu.memory_space<vmem>>, vector<2x2x128xf32>
    %1 = math.absf %0 : vector<2x2x128xf32>
    %cst = arith.constant dense<0.000000e+00> : vector<2x128xf32>
    %2 = vector.multi_reduction <add>, %1, %cst [1] : vector<2x2x128xf32> to vector<2x128xf32>
    %3 = arith.mulf %0, %0 : vector<2x2x128xf32>
    %cst_2 = arith.constant dense<0.000000e+00> : vector<2x128xf32>
    %4 = vector.multi_reduction <add>, %3, %cst_2 [1] : vector<2x2x128xf32> to vector<2x128xf32>
    %cst_3 = arith.constant dense<0.000000e+00> : vector<2xf32>
    %5 = vector.multi_reduction <add>, %2, %cst_3 [1] : vector<2x128xf32> to vector<2xf32>
    %6 = vector.shape_cast %5 : vector<2xf32> to vector<2x1xf32>
    %cst_4 = arith.constant dense<0.000000e+00> : vector<2xf32>
    %7 = vector.multi_reduction <add>, %4, %cst_4 [1] : vector<2x128xf32> to vector<2xf32>
    %8 = vector.shape_cast %7 : vector<2xf32> to vector<2x1xf32>
    %9 = vector.shape_cast %6 : vector<2x1xf32> to vector<2x1x1xf32>
    %c0_5 = arith.constant 0 : index
    %c0_6 = arith.constant 0 : index
    %c0_7 = arith.constant 0 : index
    %10 = vector.load %arg2[%c0_5, %c0_6, %c0_7] : memref<2x1x1xf32, #tpu.memory_space<vmem>>, vector<2x1x1xf32>
    tpu.vector_store %arg2[%c0_5, %c0_6, %c0_7], %9 {strides = array<i32>} : memref<2x1x1xf32, #tpu.memory_space<vmem>>, vector<2x1x1xf32>,
    %11 = vector.shape_cast %8 : vector<2x1xf32> to vector<2x1x1xf32>
    %c0_8 = arith.constant 0 : index
    %c0_9 = arith.constant 0 : index
    %c0_10 = arith.constant 0 : index
    %12 = vector.load %arg3[%c0_8, %c0_9, %c0_10] : memref<2x1x1xf32, #tpu.memory_space<vmem>>, vector<2x1x1xf32>
    tpu.vector_store %arg3[%c0_8, %c0_9, %c0_10], %11 {strides = array<i32>} : memref<2x1x1xf32, #tpu.memory_space<vmem>>, vector<2x1x1xf32>,
    return
  }
  func.func @transform_0(%arg0: i32) -> (i32, i32, i32) {
    %c0_i32 = arith.constant 0 : i32
    %c0_i32_0 = arith.constant 0 : i32
    %c0_i32_1 = arith.constant 0 : i32
    return %arg0, %c0_i32, %c0_i32_0 : i32, i32, i32
  }
  func.func @transform_1(%arg0: i32) -> (i32, i32, i32) {
    %c0_i32 = arith.constant 0 : i32
    %c0_i32_0 = arith.constant 0 : i32
    %c0_i32_1 = arith.constant 0 : i32
    return %arg0, %c0_i32, %c0_i32_0 : i32, i32, i32
  }
  func.func @transform_2(%arg0: i32) -> (i32, i32, i32) {
    %c0_i32 = arith.constant 0 : i32
    %c0_i32_0 = arith.constant 0 : i32
    %c0_i32_1 = arith.constant 0 : i32
    return %arg0, %c0_i32, %c0_i32_0 : i32, i32, i32
  }
}

</mosaic_0001>

<llo_original>
// kernel: tpu_custom_call.1
$region0: #{tpu_custom_call.1}
  #allocation0 [shape = 'u32[]', space=smem, size = 0x4, offset = 0x4, fixed_abs, tag = 'smem constant byte address 0x4 - core index']
  #allocation1 [shape = 'u32[144,128]{1,0:T(1,128)}', space=vmem, size = 0x12000, scoped, tag = 'internal scratch']
  %s0 = inlined_call_operand.hbm [shape: f32[2,2,128], index: 0, kind: input, shape index: {}]
  %s1 = inlined_call_operand.vmem [shape: f32[2,1,1], index: 1, kind: output, shape index: {0}]
  %s2 = inlined_call_operand.vmem [shape: f32[2,1,1], index: 2, kind: output, shape index: {1}]
  %3 = xla_tuple %s1, %s2
  %s4 = sld [smem:[#allocation0]]
  $region26: #{tpu_custom_call.1} parent=0
    _
  %s6 = ssub.s32 1, %s4
  %s7 = scalar_select 0, %s6, %s4
  $region1: #{tpu_custom_call.1} parent=0
    #allocation2 [shape = 'u8[2048]{0}', space=vmem, size = 0x800, scoped, tag = 'input window, operand 0, single buffered']
    #allocation3 [shape = 's32[1]{0}', space=sflag, size = 0x4, scoped, tag = 'scoped memory for tpu_custom_call.1']
    %8 = vsyncpa [#allocation3], 0
    // Predicated region
    $region2: #{tpu_custom_call.1} parent=1 // pred_check
      _
    $region3: #{tpu_custom_call.1} parent=1 // pred_check_branch
      %10 = sbr.rel (0) target = $region5
    $region4: #{tpu_custom_call.1} parent=1 // pred_region
      %s12 = ssub.s32 64, 64
      %13 = vsyncadd [#allocation3], %s12
      %s14 = sshll.u32 [#allocation2], 4
      %s15 = int_to_ptr.vmem [resolvable:$true] %s14
      %20 = dma.hbm_to_vmem [thread:$0]  %s0, 64, %s15, [#allocation3], 32, 32, 2
    $region5: #{tpu_custom_call.1} parent=1 // pred_fallthru
      _
    // Predicated region
    $region6: #{tpu_custom_call.1} parent=1 // pred_check
      _
    $region7: #{tpu_custom_call.1} parent=1 // pred_check_branch
      %22 = sbr.rel (0) target = $region9
    $region8: #{tpu_custom_call.1} parent=1 // pred_region
      %23 = dma.done [#allocation3], 64
    $region9: #{tpu_custom_call.1} parent=1 // pred_fallthru
      _
    %v24 = vld [vmem:[#allocation2] sm:$0x3]
    %v25 = vld [vmem:[#allocation2 + $0x2] sm:$0x3]
    %v26 = vand.u32 2147483647, %v24
    %v27 = vand.u32 2147483647, %v25
    %vm28 = vcmask 1041408
    %v29 = vsel %vm28, %v26, 0.0
    %v30 = vrot.slane %v29, 4
    %v31 = vadd.f32 %v29, %v30
    %v32 = vrot.slane %v31, 2
    %v33 = vadd.f32 %v31, %v32
    %v34 = vrot.slane %v33, 1
    %v35 = vadd.f32 %v33, %v34
    %v36 = vsel %vm28, %v27, 0.0
    %v37 = vrot.slane %v36, 4
    %v38 = vadd.f32 %v36, %v37
    %v39 = vrot.slane %v38, 2
    %v40 = vadd.f32 %v38, %v39
    %v41 = vrot.slane %v40, 1
    %v42 = vadd.f32 %v40, %v41
    %v43 = vmul.f32 %v24, %v24
    %v44 = vmul.f32 %v25, %v25
    %v45 = vsel %vm28, %v43, 0.0
    %v46 = vrot.slane %v45, 4
    %v47 = vadd.f32 %v45, %v46
    %v48 = vrot.slane %v47, 2
    %v49 = vadd.f32 %v47, %v48
    %v50 = vrot.slane %v49, 1
    %v51 = vadd.f32 %v49, %v50
    %v52 = vsel %vm28, %v44, 0.0
    %v53 = vrot.slane %v52, 4
    %v54 = vadd.f32 %v52, %v53
    %v55 = vrot.slane %v54, 2
    %v56 = vadd.f32 %v54, %v55
    %v57 = vrot.slane %v56, 1
    %v58 = vadd.f32 %v56, %v57
    %vm61 = vcmask 1041409
    %v62 = vsel %vm61, %v42, %v35
    %v64 = vsel %vm28, %v62, 0.0
    %65 = vadd.xlane.f32.xlu0 %v64
    %v66 = vpop.xlane.xlu0 %65
    %v69 = vsel %vm61, %v58, %v51
    %v71 = vsel %vm28, %v69, 0.0
    %72 = vadd.xlane.f32.xlu0 %v71
    %v73 = vpop.xlane.xlu0 %72
    %v75 = vlaneseq
    %v76 = vshrl.u32 %v75, 7
    %v77 = vsub.s32 0, %v76
    %v78 = vrot.slane %v66, %v77
    %v79 = vlaneseq
    %v80 = vshrl.u32 %v79, 7
    %v81 = vsub.s32 1, %v80
    %v82 = vrot.slane %v66, %v81
    %vm85 = vcmask 0
    %86 = vst.msk [vmem:[%s1] sm:$0x1] %vm85, %v78
    %87 = vst.msk [vmem:[%s1 + $0x1] sm:$0x1] %vm85, %v82
    %v89 = vlaneseq
    %v90 = vshrl.u32 %v89, 7
    %v91 = vsub.s32 0, %v90
    %v92 = vrot.slane %v73, %v91
    %v93 = vlaneseq
    %v94 = vshrl.u32 %v93, 7
    %v95 = vsub.s32 1, %v94
    %v96 = vrot.slane %v73, %v95
    %99 = vst.msk [vmem:[%s2] sm:$0x1] %vm85, %v92
    %100 = vst.msk [vmem:[%s2 + $0x1] sm:$0x1] %vm85, %v96
    // Predicated region
    $region10: #{tpu_custom_call.1} parent=1 // pred_check
      _
    $region11: #{tpu_custom_call.1} parent=1 // pred_check_branch
      %102 = sbr.rel (0) target = $region13
    $region12: #{tpu_custom_call.1} parent=1 // pred_region
      _
    $region13: #{tpu_custom_call.1} parent=1 // pred_fallthru
      _
    // Predicated region
    $region14: #{tpu_custom_call.1} parent=1 // pred_check
      _
    $region15: #{tpu_custom_call.1} parent=1 // pred_check_branch
      %104 = sbr.rel (0) target = $region17
    $region16: #{tpu_custom_call.1} parent=1 // pred_region
      _
    $region17: #{tpu_custom_call.1} parent=1 // pred_fallthru
      _
    // Predicated region
    $region18: #{tpu_custom_call.1} parent=1 // pred_check
      _
    $region19: #{tpu_custom_call.1} parent=1 // pred_check_branch
      %106 = sbr.rel (0) target = $region21
    $region20: #{tpu_custom_call.1} parent=1 // pred_region
      _
    $region21: #{tpu_custom_call.1} parent=1 // pred_fallthru
      _
    // Predicated region
    $region22: #{tpu_custom_call.1} parent=1 // pred_check
      _
    $region23: #{tpu_custom_call.1} parent=1 // pred_check_branch
      %108 = sbr.rel (0) target = $region25
    $region24: #{tpu_custom_call.1} parent=1 // pred_region
      _
    $region25: #{tpu_custom_call.1} parent=1 // pred_fallthru
      _
    %109 = vsyncpa [#allocation3], 1

</llo_original>
